<compile_context>
chip_gen: v7x
topology: tpu7x:2x2x1
jax: 0.10.0
libtpu: 0.0.40
codegen_flags: <defaults>
</compile_context>

<pallas_src>
import functools

import jax
import jax.numpy as jnp
from jax.experimental import pallas as pl
from jax.experimental.pallas import tpu as pltpu

NUM_CLASSES = 1        # single-object tracking => classes {0, no-object=1}
EOS_COEF = 0.0625      # weight of the "no object" class (empty_weight[-1])


def _criterion_kernel(num_classes, eos_coef, n_valid, w_lanes,
                      logits_ref, boxes_ref, tcls_ref, tboxes_ref,
                      out_ref, acc_ref):
    """Per-tile body.  Sublane+lane dense shapes (query n -> (n // W, n % W)):
         logits_ref : [C*8, T]   boxes_ref/tboxes_ref : [4*8, T]
         tcls_ref   : [8, T]     out_ref : [1, 8, 128]   acc_ref : [8, 128] f32
    """
    core = pl.program_id(0)
    step = pl.program_id(1)

    @pl.when(step == 0)
    def _init():
        acc_ref[...] = jnp.zeros_like(acc_ref)

    c8, t = logits_ref.shape
    c = c8 // 8

    logits = logits_ref[...].astype(jnp.float32)   # [C*8, T]
    boxes = boxes_ref[...].astype(jnp.float32)     # [32, T] (cx, cy, w, h)
    tboxes = tboxes_ref[...].astype(jnp.float32)   # [32, T]
    tcls = tcls_ref[...].astype(jnp.int32)         # [8, T]

    # 2-D validity mask: drops the <8 reshape-pad elements, the garbage lanes
    # of a partial edge tile and any duplicated (clamped) tiles of core 1.
    sub = jax.lax.broadcasted_iota(jnp.int32, (8, t), 0)
    lane = jax.lax.broadcasted_iota(jnp.int32, (8, t), 1)
    gl = (core * pl.num_programs(1) + step) * t + lane          # global lane
    valid = (gl < w_lanes) & (sub * w_lanes + gl < n_valid)

    # ---------------- weighted cross entropy (F.cross_entropy w/ weights) ----
    rows = [logits[i * 8:(i + 1) * 8, :] for i in range(c)]     # each (8, T)
    if c == 2:
        max_l = jnp.maximum(rows[0], rows[1])
        min_l = jnp.minimum(rows[0], rows[1])
        lse = max_l + jnp.log(1.0 + jnp.exp(min_l - max_l))     # 1 exp + 1 log
    else:
        max_l = rows[0]
        for r in rows[1:]:
            max_l = jnp.maximum(max_l, r)
        se = jnp.exp(rows[0] - max_l)
        for r in rows[1:]:
            se = se + jnp.exp(r - max_l)
        lse = jnp.log(se) + max_l
    tgt_logit = rows[0]
    for i in range(1, c):
        tgt_logit = jnp.where(tcls == i, rows[i], tgt_logit)
    nll = lse - tgt_logit                                        # (8, T)

    is_noobj = tcls == num_classes
    w_raw = jnp.where(is_noobj, eos_coef, 1.0)
    # jnp.where gating (not multiply) so garbage/NaN in invalid lanes can't
    # poison the sums when running without explicit tail padding.
    ce_term = jnp.where(valid, w_raw * nll, 0.0)
    w_per = jnp.where(valid, w_raw, 0.0)

    matched_b = valid & jnp.logical_not(is_noobj)
    matched = matched_b.astype(jnp.float32)
    # TODO(synk): torch accuracy() uses argmax with lowest-index tie-break;
    # here an exact logit tie with another class counts as correct.
    correct = (matched_b & (tgt_logit >= max_l)).astype(jnp.float32)

    # ---------------- L1 box loss ---------------------------------------------
    scx, scy, sw, sh = (boxes[i * 8:(i + 1) * 8, :] for i in range(4))
    tcx, tcy, tw, th = (tboxes[i * 8:(i + 1) * 8, :] for i in range(4))
    l1 = (jnp.abs(scx - tcx) + jnp.abs(scy - tcy) +
          jnp.abs(sw - tw) + jnp.abs(sh - th))                   # (8, T)

    # ---------------- GIoU / IoU (diag of pairwise == elementwise) ------------
    sx0, sy0 = scx - 0.5 * sw, scy - 0.5 * sh
    sx1, sy1 = scx + 0.5 * sw, scy + 0.5 * sh
    tx0, ty0 = tcx - 0.5 * tw, tcy - 0.5 * th
    tx1, ty1 = tcx + 0.5 * tw, tcy + 0.5 * th
    area_s = (sx1 - sx0) * (sy1 - sy0)
    area_t = (tx1 - tx0) * (ty1 - ty0)
    inter = (jnp.maximum(jnp.minimum(sx1, tx1) - jnp.maximum(sx0, tx0), 0.0) *
             jnp.maximum(jnp.minimum(sy1, ty1) - jnp.maximum(sy0, ty0), 0.0))
    union = area_s + area_t - inter
    iou = inter / jnp.maximum(union, 1e-12)
    area_c = (jnp.maximum(jnp.maximum(sx1, tx1) - jnp.minimum(sx0, tx0), 0.0) *
              jnp.maximum(jnp.maximum(sy1, ty1) - jnp.minimum(sy0, ty0), 0.0))
    giou = iou - (area_c - union) / jnp.maximum(area_c, 1e-12)

    # ---------------- single-RMW accumulation ---------------------------------
    terms = (ce_term,                                   # sum(w * nll)
             w_per,                                     # sum(w)
             matched,                                   # num matched
             correct,                                   # matched & correct
             jnp.where(matched_b, l1, 0.0),             # L1
             jnp.where(matched_b, 1.0 - giou, 0.0),     # GIoU loss
             jnp.where(matched_b, iou, 0.0))            # IoU

    lane128 = jax.lax.broadcasted_iota(jnp.int32, (8, 128), 1)
    partial = jnp.zeros((8, 128), jnp.float32)
    for i, q in enumerate(terms):
        s = jnp.sum(q, axis=1, keepdims=True)           # (8, 1) lane reduce
        partial = partial + jnp.where(lane128 == i, s, 0.0)
    acc_ref[...] += partial                             # one (8,128) RMW / step

    @pl.when(step == pl.num_programs(1) - 1)
    def _finalize():
        out_ref[0, :, :] = acc_ref[...]                 # per-core raw sums


def set_criterion_forward(pred_logits, pred_boxes, tgt_classes_dense,
                          tgt_boxes_dense, eos_coef=EOS_COEF,
                          num_classes=NUM_CLASSES, max_tile_lanes=16384):
    """pred_logits: [B,Q,num_classes+1], pred_boxes: [B,Q,4] (cxcywh in (0,1)),
    tgt_classes_dense: [B,Q] int (num_classes == "no object"),
    tgt_boxes_dense: [B,Q,4].  Inputs may be bf16; compute is f32 in-kernel."""
    b, q, c = pred_logits.shape
    n = b * q
    w = pl.cdiv(n, 8)          # lanes after 8-sublane packing
    n8 = 8 * w                 # N padded to a multiple of 8 (<= 7 extra elems)

    # Sublane+lane dense layout: query n -> (sublane n // w, lane n % w).
    # With allow_input_fusion these reshapes/transposes fuse into the
    # pallas_call operands instead of materializing extra HBM copies.
    def pack(x2d):             # [N, K] -> [K*8, W]
        k = x2d.shape[1]
        y = x2d.T              # [K, N]
        if n8 > n:
            y = jnp.pad(y, ((0, 0), (0, n8 - n)))
        return y.reshape(k * 8, w)

    logits = pack(pred_logits.reshape(n, c))
    boxes = pack(pred_boxes.reshape(n, 4))
    tboxes = pack(tgt_boxes_dense.reshape(n, 4))
    tcls = pack(tgt_classes_dense.reshape(n, 1).astype(jnp.int32))

    # Lane tiling: one full-width block if it fits, else 128-multiple tiles.
    tile = w if w <= max_tile_lanes else max_tile_lanes
    num_tiles = pl.cdiv(w, tile)
    num_cores = 2 if num_tiles >= 2 else 1     # split lane tiles across TCs (v7x)
    tiles_per_core = pl.cdiv(num_tiles, num_cores)

    def idx(ci, ti):
        # Clamp so the second core never maps a fully out-of-bounds block;
        # duplicated lanes are zeroed by the in-kernel validity mask.
        return jnp.minimum(ci * tiles_per_core + ti, num_tiles - 1)

    kernel = functools.partial(_criterion_kernel, num_classes, float(eos_coef),
                               n, w)

    out = pl.pallas_call(
        kernel,
        out_shape=jax.ShapeDtypeStruct((num_cores, 8, 128), jnp.float32),
        grid_spec=pltpu.PrefetchScalarGridSpec(
            num_scalar_prefetch=0,
            grid=(num_cores, tiles_per_core),
            in_specs=[pl.BlockSpec((c * 8, tile), lambda ci, ti: (0, idx(ci, ti))),
                      pl.BlockSpec((32, tile), lambda ci, ti: (0, idx(ci, ti))),
                      pl.BlockSpec((8, tile), lambda ci, ti: (0, idx(ci, ti))),
                      pl.BlockSpec((32, tile), lambda ci, ti: (0, idx(ci, ti)))],
            out_specs=pl.BlockSpec((1, 8, 128), lambda ci, ti: (ci, 0, 0)),
            scratch_shapes=[pltpu.VMEM((8, 128), jnp.float32)]),
        compiler_params=pltpu.CompilerParams(
            dimension_semantics=("parallel", "arbitrary"),
            allow_input_fusion=[True, True, True, True],
            vmem_limit_bytes=32 * 1024 * 1024),
    )(logits, boxes, tcls, tboxes)

    # Combine per-core / per-sublane partials and normalize (tiny scalar math).
    sums = jnp.sum(out, axis=(0, 1))                    # (128,)
    wnll, wsum, nmatch, ncorr, l1sum, gsum, isum = (sums[i] for i in range(7))
    # TODO(synk): torch SetCriterion all-reduces num_boxes across processes
    # before clamping; here the per-device matched count is used.
    num_boxes = jnp.maximum(nmatch, 1.0)
    return {
        'loss_ce': wnll / wsum,
        'class_error': 100.0 - 100.0 * ncorr / num_boxes,
        'loss_bbox': l1sum / num_boxes,
        'loss_giou': gsum / num_boxes,
        'iou': isum / num_boxes,
    }


def _reference(pred_logits, pred_boxes, tgt_classes_dense, tgt_boxes_dense,
               eos_coef=EOS_COEF, num_classes=NUM_CLASSES):
    """Pure-JAX reference for validation."""
    b, q, c = pred_logits.shape
    logits = pred_logits.reshape(-1, c).astype(jnp.float32)
    boxes = pred_boxes.reshape(-1, 4).astype(jnp.float32)
    tcls = tgt_classes_dense.reshape(-1).astype(jnp.int32)
    tboxes = tgt_boxes_dense.reshape(-1, 4).astype(jnp.float32)
    empty_w = jnp.ones((c,), jnp.float32).at[c - 1].set(eos_coef)

    logp = jax.nn.log_softmax(logits, axis=-1)
    nll = -jnp.take_along_axis(logp, tcls[:, None], axis=-1)[:, 0]
    w_per = empty_w[tcls]
    loss_ce = jnp.sum(w_per * nll) / jnp.sum(w_per)

    matched = (tcls != num_classes).astype(jnp.float32)
    num_boxes = jnp.maximum(jnp.sum(matched), 1.0)
    tgt_logit = jnp.take_along_axis(logits, tcls[:, None], axis=-1)[:, 0]
    correct = (tgt_logit >= jnp.max(logits, axis=-1)).astype(jnp.float32)
    class_error = 100.0 - 100.0 * jnp.sum(matched * correct) / num_boxes

    loss_bbox = jnp.sum(matched * jnp.sum(jnp.abs(boxes - tboxes), -1)) / num_boxes

    def to_xyxy(bb):
        cx, cy, w, h = bb[:, 0], bb[:, 1], bb[:, 2], bb[:, 3]
        return cx - 0.5 * w, cy - 0.5 * h, cx + 0.5 * w, cy + 0.5 * h

    sx0, sy0, sx1, sy1 = to_xyxy(boxes)
    tx0, ty0, tx1, ty1 = to_xyxy(tboxes)
    area_s = (sx1 - sx0) * (sy1 - sy0)
    area_t = (tx1 - tx0) * (ty1 - ty0)
    inter = jnp.maximum(jnp.minimum(sx1, tx1) - jnp.maximum(sx0, tx0), 0.0) * \
        jnp.maximum(jnp.minimum(sy1, ty1) - jnp.maximum(sy0, ty0), 0.0)
    union = area_s + area_t - inter
    iou = inter / jnp.maximum(union, 1e-12)
    area_c = jnp.maximum(jnp.maximum(sx1, tx1) - jnp.minimum(sx0, tx0), 0.0) * \
        jnp.maximum(jnp.maximum(sy1, ty1) - jnp.minimum(sy0, ty0), 0.0)
    giou = iou - (area_c - union) / jnp.maximum(area_c, 1e-12)

    return {
        'loss_ce': loss_ce,
        'class_error': class_error,
        'loss_bbox': loss_bbox,
        'loss_giou': jnp.sum(matched * (1.0 - giou)) / num_boxes,
        'iou': jnp.sum(matched * iou) / num_boxes,
    }


if __name__ == "__main__":
    key = jax.random.PRNGKey(0)
    B, Q = 2, 8
    C = NUM_CLASSES + 1

    k1, k2, k3 = jax.random.split(key, 3)
    pred_logits = jax.random.normal(k1, (B, Q, C), jnp.float32)
    pred_boxes = jax.nn.sigmoid(jax.random.normal(k2, (B, Q, 4), jnp.float32))

    # TODO(synk): the matcher is an injected nn.Module; simulate its output
    # with deterministic matched (query, target) indices per batch element.
    indices = [
        (jnp.array([1, 5], jnp.int32), jnp.array([0, 1], jnp.int32)),  # batch 0
        (jnp.array([3], jnp.int32), jnp.array([0], jnp.int32)),        # batch 1
    ]
    gt_boxes = [
        jax.nn.sigmoid(jax.random.normal(k3, (2, 4), jnp.float32)),    # 2 GT boxes
        jax.nn.sigmoid(jax.random.normal(jax.random.fold_in(k3, 1), (1, 4),
                                         jnp.float32)),                # 1 GT box
    ]
    gt_labels = [jnp.zeros((2,), jnp.int32), jnp.zeros((1,), jnp.int32)]

    # Densify matcher output: per-query class + per-query assigned GT box.
    tgt_classes_dense = jnp.full((B, Q), NUM_CLASSES, jnp.int32)
    tgt_boxes_dense = jnp.zeros((B, Q, 4), jnp.float32)
    for bi, (src, tgt) in enumerate(indices):
        tgt_classes_dense = tgt_classes_dense.at[bi, src].set(gt_labels[bi][tgt])
        tgt_boxes_dense = tgt_boxes_dense.at[bi, src].set(gt_boxes[bi][tgt])

    losses = set_criterion_forward(pred_logits, pred_boxes,
                                   tgt_classes_dense, tgt_boxes_dense)
    losses = jax.tree_util.tree_map(jax.block_until_ready, losses)

    ref = _reference(pred_logits, pred_boxes, tgt_classes_dense, tgt_boxes_dense)
    for k in ('loss_ce', 'class_error', 'loss_bbox', 'loss_giou', 'iou'):
        assert jnp.allclose(losses[k], ref[k], rtol=1e-3, atol=1e-3), \
            (k, float(losses[k]), float(ref[k]))

    print("KERNEL_OK")
</pallas_src>

<mosaic_0001>
module attributes {stable_mosaic.version = 11 : i64} {
  func.func @_criterion_kernel(%arg0: i32, %arg1: i32, %arg2: memref<16x2xf32, #tpu.memory_space<vmem>>, %arg3: memref<32x2xf32, #tpu.memory_space<vmem>>, %arg4: memref<8x2xi32, #tpu.memory_space<vmem>>, %arg5: memref<32x2xf32, #tpu.memory_space<vmem>>, %arg6: memref<1x8x128xf32, #tpu.memory_space<vmem>>, %arg7: memref<8x128xf32, #tpu.memory_space<vmem>>) attributes {dimension_semantics = [#tpu.dimension_semantics<parallel>, #tpu.dimension_semantics<arbitrary>], iteration_bounds = array<i64: 1, 1>, scalar_prefetch = 0 : i64, scratch_operands = 1 : i64, tpu.core_type = #tpu.core_type<tc>, window_params = [{transform_indices = @transform_0, window_bounds = array<i64: 16, 2>}, {transform_indices = @transform_1, window_bounds = array<i64: 32, 2>}, {transform_indices = @transform_2, window_bounds = array<i64: 8, 2>}, {transform_indices = @transform_3, window_bounds = array<i64: 32, 2>}, {transform_indices = @transform_4, window_bounds = array<i64: 1, 8, 128>}]} {
    %c0_i32 = arith.constant 0 : i32
    %0 = arith.cmpi eq, %arg1, %c0_i32 : i32
    %1 = arith.extui %0 : i1 to i32
    %c0_i32_0 = arith.constant 0 : i32
    %2 = arith.cmpi ne, %1, %c0_i32_0 : i32
    scf.if %2 {
      %cst_59 = arith.constant 0.000000e+00 : f32
      %214 = vector.broadcast %cst_59 : f32 to vector<8x128xf32>
      %c0_60 = arith.constant 0 : index
      %c0_61 = arith.constant 0 : index
      %215 = vector.load %arg7[%c0_60, %c0_61] : memref<8x128xf32, #tpu.memory_space<vmem>>, vector<8x128xf32>
      tpu.vector_store %arg7[%c0_60, %c0_61], %214 {strides = array<i32>} : memref<8x128xf32, #tpu.memory_space<vmem>>, vector<8x128xf32>,
    } else {
    }
    %c0 = arith.constant 0 : index
    %c0_1 = arith.constant 0 : index
    %3 = vector.load %arg2[%c0, %c0_1] : memref<16x2xf32, #tpu.memory_space<vmem>>, vector<16x2xf32>
    %c0_2 = arith.constant 0 : index
    %c0_3 = arith.constant 0 : index
    %4 = vector.load %arg3[%c0_2, %c0_3] : memref<32x2xf32, #tpu.memory_space<vmem>>, vector<32x2xf32>
    %c0_4 = arith.constant 0 : index
    %c0_5 = arith.constant 0 : index
    %5 = vector.load %arg5[%c0_4, %c0_5] : memref<32x2xf32, #tpu.memory_space<vmem>>, vector<32x2xf32>
    %c0_6 = arith.constant 0 : index
    %c0_7 = arith.constant 0 : index
    %6 = vector.load %arg4[%c0_6, %c0_7] : memref<8x2xi32, #tpu.memory_space<vmem>>, vector<8x2xi32>
    %7 = tpu.iota {dimensions = array<i32: 0>} : vector<8x2xi32>
    %8 = tpu.iota {dimensions = array<i32: 1>} : vector<8x2xi32>
    %c1_i32 = arith.constant 1 : i32
    %9 = arith.muli %arg0, %c1_i32 : i32
    %10 = arith.addi %9, %arg1 : i32
    %c2_i32 = arith.constant 2 : i32
    %11 = arith.muli %10, %c2_i32 : i32
    %12 = vector.broadcast %11 : i32 to vector<8x2xi32>
    %13 = arith.addi %12, %8 : vector<8x2xi32>
    %c2_i32_8 = arith.constant 2 : i32
    %14 = vector.broadcast %c2_i32_8 : i32 to vector<8x2xi32>
    %15 = arith.cmpi slt, %13, %14 : vector<8x2xi32>
    %c2_i32_9 = arith.constant 2 : i32
    %16 = vector.broadcast %c2_i32_9 : i32 to vector<8x2xi32>
    %17 = arith.muli %7, %16 : vector<8x2xi32>
    %18 = arith.addi %17, %13 : vector<8x2xi32>
    %c16_i32 = arith.constant 16 : i32
    %19 = vector.broadcast %c16_i32 : i32 to vector<8x2xi32>
    %20 = arith.cmpi slt, %18, %19 : vector<8x2xi32>
    %21 = arith.andi %15, %20 : vector<8x2xi1>
    %22 = vector.extract_strided_slice %3 {offsets = [0, 0], sizes = [8, 2], strides = [1, 1]} : vector<16x2xf32> to vector<8x2xf32>
    %23 = vector.extract_strided_slice %3 {offsets = [8, 0], sizes = [8, 2], strides = [1, 1]} : vector<16x2xf32> to vector<8x2xf32>
    %24 = arith.maximumf %22, %23 : vector<8x2xf32>
    %25 = arith.minimumf %22, %23 : vector<8x2xf32>
    %26 = arith.subf %25, %24 : vector<8x2xf32>
    %27 = math.exp %26 : vector<8x2xf32>
    %cst = arith.constant 1.000000e+00 : f32
    %28 = vector.broadcast %cst : f32 to vector<8x2xf32>
    %29 = arith.addf %28, %27 : vector<8x2xf32>
    %30 = math.log %29 : vector<8x2xf32>
    %31 = arith.addf %24, %30 : vector<8x2xf32>
    %c1_i32_10 = arith.constant 1 : i32
    %32 = vector.broadcast %c1_i32_10 : i32 to vector<8x2xi32>
    %33 = arith.cmpi eq, %6, %32 : vector<8x2xi32>
    %34 = arith.select %33, %23, %22 : vector<8x2xi1>, vector<8x2xf32>
    %35 = arith.subf %31, %34 : vector<8x2xf32>
    %c1_i32_11 = arith.constant 1 : i32
    %36 = vector.broadcast %c1_i32_11 : i32 to vector<8x2xi32>
    %37 = arith.cmpi eq, %6, %36 : vector<8x2xi32>
    %cst_12 = arith.constant 6.250000e-02 : f32
    %cst_13 = arith.constant 1.000000e+00 : f32
    %38 = vector.broadcast %cst_12 : f32 to vector<8x2xf32>
    %39 = vector.broadcast %cst_13 : f32 to vector<8x2xf32>
    %40 = arith.select %37, %38, %39 : vector<8x2xi1>, vector<8x2xf32>
    %41 = arith.mulf %40, %35 : vector<8x2xf32>
    %cst_14 = arith.constant 0.000000e+00 : f32
    %42 = vector.broadcast %cst_14 : f32 to vector<8x2xf32>
    %43 = arith.select %21, %41, %42 : vector<8x2xi1>, vector<8x2xf32>
    %cst_15 = arith.constant 0.000000e+00 : f32
    %44 = vector.broadcast %cst_15 : f32 to vector<8x2xf32>
    %45 = arith.select %21, %40, %44 : vector<8x2xi1>, vector<8x2xf32>
    %cst_16 = arith.constant dense<true> : vector<8x2xi1>
    %46 = arith.xori %37, %cst_16 : vector<8x2xi1>
    %47 = arith.andi %21, %46 : vector<8x2xi1>
    %48 = arith.extui %47 : vector<8x2xi1> to vector<8x2xi32>
    %49 = arith.sitofp %48 : vector<8x2xi32> to vector<8x2xf32>
    %50 = arith.cmpf oge, %34, %24 : vector<8x2xf32>
    %51 = arith.andi %47, %50 : vector<8x2xi1>
    %52 = arith.extui %51 : vector<8x2xi1> to vector<8x2xi32>
    %53 = arith.sitofp %52 : vector<8x2xi32> to vector<8x2xf32>
    %54 = vector.extract_strided_slice %4 {offsets = [0, 0], sizes = [8, 2], strides = [1, 1]} : vector<32x2xf32> to vector<8x2xf32>
    %55 = vector.extract_strided_slice %4 {offsets = [8, 0], sizes = [8, 2], strides = [1, 1]} : vector<32x2xf32> to vector<8x2xf32>
    %56 = vector.extract_strided_slice %4 {offsets = [16, 0], sizes = [8, 2], strides = [1, 1]} : vector<32x2xf32> to vector<8x2xf32>
    %57 = vector.extract_strided_slice %4 {offsets = [24, 0], sizes = [8, 2], strides = [1, 1]} : vector<32x2xf32> to vector<8x2xf32>
    %58 = vector.extract_strided_slice %5 {offsets = [0, 0], sizes = [8, 2], strides = [1, 1]} : vector<32x2xf32> to vector<8x2xf32>
    %59 = vector.extract_strided_slice %5 {offsets = [8, 0], sizes = [8, 2], strides = [1, 1]} : vector<32x2xf32> to vector<8x2xf32>
    %60 = vector.extract_strided_slice %5 {offsets = [16, 0], sizes = [8, 2], strides = [1, 1]} : vector<32x2xf32> to vector<8x2xf32>
    %61 = vector.extract_strided_slice %5 {offsets = [24, 0], sizes = [8, 2], strides = [1, 1]} : vector<32x2xf32> to vector<8x2xf32>
    %62 = arith.subf %54, %58 : vector<8x2xf32>
    %63 = math.absf %62 : vector<8x2xf32>
    %64 = arith.subf %55, %59 : vector<8x2xf32>
    %65 = math.absf %64 : vector<8x2xf32>
    %66 = arith.addf %63, %65 : vector<8x2xf32>
    %67 = arith.subf %56, %60 : vector<8x2xf32>
    %68 = math.absf %67 : vector<8x2xf32>
    %69 = arith.addf %66, %68 : vector<8x2xf32>
    %70 = arith.subf %57, %61 : vector<8x2xf32>
    %71 = math.absf %70 : vector<8x2xf32>
    %72 = arith.addf %69, %71 : vector<8x2xf32>
    %cst_17 = arith.constant 5.000000e-01 : f32
    %73 = vector.broadcast %cst_17 : f32 to vector<8x2xf32>
    %74 = arith.mulf %73, %56 : vector<8x2xf32>
    %75 = arith.subf %54, %74 : vector<8x2xf32>
    %cst_18 = arith.constant 5.000000e-01 : f32
    %76 = vector.broadcast %cst_18 : f32 to vector<8x2xf32>
    %77 = arith.mulf %76, %57 : vector<8x2xf32>
    %78 = arith.subf %55, %77 : vector<8x2xf32>
    %cst_19 = arith.constant 5.000000e-01 : f32
    %79 = vector.broadcast %cst_19 : f32 to vector<8x2xf32>
    %80 = arith.mulf %79, %56 : vector<8x2xf32>
    %81 = arith.addf %54, %80 : vector<8x2xf32>
    %cst_20 = arith.constant 5.000000e-01 : f32
    %82 = vector.broadcast %cst_20 : f32 to vector<8x2xf32>
    %83 = arith.mulf %82, %57 : vector<8x2xf32>
    %84 = arith.addf %55, %83 : vector<8x2xf32>
    %cst_21 = arith.constant 5.000000e-01 : f32
    %85 = vector.broadcast %cst_21 : f32 to vector<8x2xf32>
    %86 = arith.mulf %85, %60 : vector<8x2xf32>
    %87 = arith.subf %58, %86 : vector<8x2xf32>
    %cst_22 = arith.constant 5.000000e-01 : f32
    %88 = vector.broadcast %cst_22 : f32 to vector<8x2xf32>
    %89 = arith.mulf %88, %61 : vector<8x2xf32>
    %90 = arith.subf %59, %89 : vector<8x2xf32>
    %cst_23 = arith.constant 5.000000e-01 : f32
    %91 = vector.broadcast %cst_23 : f32 to vector<8x2xf32>
    %92 = arith.mulf %91, %60 : vector<8x2xf32>
    %93 = arith.addf %58, %92 : vector<8x2xf32>
    %cst_24 = arith.constant 5.000000e-01 : f32
    %94 = vector.broadcast %cst_24 : f32 to vector<8x2xf32>
    %95 = arith.mulf %94, %61 : vector<8x2xf32>
    %96 = arith.addf %59, %95 : vector<8x2xf32>
    %97 = arith.subf %81, %75 : vector<8x2xf32>
    %98 = arith.subf %84, %78 : vector<8x2xf32>
    %99 = arith.mulf %97, %98 : vector<8x2xf32>
    %100 = arith.subf %93, %87 : vector<8x2xf32>
    %101 = arith.subf %96, %90 : vector<8x2xf32>
    %102 = arith.mulf %100, %101 : vector<8x2xf32>
    %103 = arith.minimumf %81, %93 : vector<8x2xf32>
    %104 = arith.maximumf %75, %87 : vector<8x2xf32>
    %105 = arith.subf %103, %104 : vector<8x2xf32>
    %cst_25 = arith.constant 0.000000e+00 : f32
    %106 = vector.broadcast %cst_25 : f32 to vector<8x2xf32>
    %107 = arith.maximumf %105, %106 : vector<8x2xf32>
    %108 = arith.minimumf %84, %96 : vector<8x2xf32>
    %109 = arith.maximumf %78, %90 : vector<8x2xf32>
    %110 = arith.subf %108, %109 : vector<8x2xf32>
    %cst_26 = arith.constant 0.000000e+00 : f32
    %111 = vector.broadcast %cst_26 : f32 to vector<8x2xf32>
    %112 = arith.maximumf %110, %111 : vector<8x2xf32>
    %113 = arith.mulf %107, %112 : vector<8x2xf32>
    %114 = arith.addf %99, %102 : vector<8x2xf32>
    %115 = arith.subf %114, %113 : vector<8x2xf32>
    %cst_27 = arith.constant 9.99999996E-13 : f32
    %116 = vector.broadcast %cst_27 : f32 to vector<8x2xf32>
    %117 = arith.maximumf %115, %116 : vector<8x2xf32>
    %118 = arith.divf %113, %117 : vector<8x2xf32>
    %119 = arith.maximumf %81, %93 : vector<8x2xf32>
    %120 = arith.minimumf %75, %87 : vector<8x2xf32>
    %121 = arith.subf %119, %120 : vector<8x2xf32>
    %cst_28 = arith.constant 0.000000e+00 : f32
    %122 = vector.broadcast %cst_28 : f32 to vector<8x2xf32>
    %123 = arith.maximumf %121, %122 : vector<8x2xf32>
    %124 = arith.maximumf %84, %96 : vector<8x2xf32>
    %125 = arith.minimumf %78, %90 : vector<8x2xf32>
    %126 = arith.subf %124, %125 : vector<8x2xf32>
    %cst_29 = arith.constant 0.000000e+00 : f32
    %127 = vector.broadcast %cst_29 : f32 to vector<8x2xf32>
    %128 = arith.maximumf %126, %127 : vector<8x2xf32>
    %129 = arith.mulf %123, %128 : vector<8x2xf32>
    %130 = arith.subf %129, %115 : vector<8x2xf32>
    %cst_30 = arith.constant 9.99999996E-13 : f32
    %131 = vector.broadcast %cst_30 : f32 to vector<8x2xf32>
    %132 = arith.maximumf %129, %131 : vector<8x2xf32>
    %133 = arith.divf %130, %132 : vector<8x2xf32>
    %134 = arith.subf %118, %133 : vector<8x2xf32>
    %cst_31 = arith.constant 0.000000e+00 : f32
    %135 = vector.broadcast %cst_31 : f32 to vector<8x2xf32>
    %136 = arith.select %47, %72, %135 : vector<8x2xi1>, vector<8x2xf32>
    %cst_32 = arith.constant 1.000000e+00 : f32
    %137 = vector.broadcast %cst_32 : f32 to vector<8x2xf32>
    %138 = arith.subf %137, %134 : vector<8x2xf32>
    %cst_33 = arith.constant 0.000000e+00 : f32
    %139 = vector.broadcast %cst_33 : f32 to vector<8x2xf32>
    %140 = arith.select %47, %138, %139 : vector<8x2xi1>, vector<8x2xf32>
    %cst_34 = arith.constant 0.000000e+00 : f32
    %141 = vector.broadcast %cst_34 : f32 to vector<8x2xf32>
    %142 = arith.select %47, %118, %141 : vector<8x2xi1>, vector<8x2xf32>
    %143 = tpu.iota {dimensions = array<i32: 1>} : vector<8x128xi32>
    %cst_35 = arith.constant 0.000000e+00 : f32
    %144 = vector.broadcast %cst_35 : f32 to vector<8x128xf32>
    %cst_36 = arith.constant dense<0.000000e+00> : vector<8xf32>
    %145 = vector.multi_reduction <add>, %43, %cst_36 [1] : vector<8x2xf32> to vector<8xf32>
    %146 = vector.shape_cast %145 : vector<8xf32> to vector<8x1xf32>
    %c0_i32_37 = arith.constant 0 : i32
    %147 = vector.broadcast %c0_i32_37 : i32 to vector<8x128xi32>
    %148 = arith.cmpi eq, %143, %147 : vector<8x128xi32>
    %cst_38 = arith.constant 0.000000e+00 : f32
    %149 = vector.shape_cast %146 : vector<8x1xf32> to vector<8x1xf32>
    %150 = vector.broadcast %149 : vector<8x1xf32> to vector<8x128xf32>
    %151 = vector.broadcast %cst_38 : f32 to vector<8x128xf32>
    %152 = arith.select %148, %150, %151 : vector<8x128xi1>, vector<8x128xf32>
    %153 = arith.addf %144, %152 : vector<8x128xf32>
    %cst_39 = arith.constant dense<0.000000e+00> : vector<8xf32>
    %154 = vector.multi_reduction <add>, %45, %cst_39 [1] : vector<8x2xf32> to vector<8xf32>
    %155 = vector.shape_cast %154 : vector<8xf32> to vector<8x1xf32>
    %c1_i32_40 = arith.constant 1 : i32
    %156 = vector.broadcast %c1_i32_40 : i32 to vector<8x128xi32>
    %157 = arith.cmpi eq, %143, %156 : vector<8x128xi32>
    %cst_41 = arith.constant 0.000000e+00 : f32
    %158 = vector.shape_cast %155 : vector<8x1xf32> to vector<8x1xf32>
    %159 = vector.broadcast %158 : vector<8x1xf32> to vector<8x128xf32>
    %160 = vector.broadcast %cst_41 : f32 to vector<8x128xf32>
    %161 = arith.select %157, %159, %160 : vector<8x128xi1>, vector<8x128xf32>
    %162 = arith.addf %153, %161 : vector<8x128xf32>
    %cst_42 = arith.constant dense<0.000000e+00> : vector<8xf32>
    %163 = vector.multi_reduction <add>, %49, %cst_42 [1] : vector<8x2xf32> to vector<8xf32>
    %164 = vector.shape_cast %163 : vector<8xf32> to vector<8x1xf32>
    %c2_i32_43 = arith.constant 2 : i32
    %165 = vector.broadcast %c2_i32_43 : i32 to vector<8x128xi32>
    %166 = arith.cmpi eq, %143, %165 : vector<8x128xi32>
    %cst_44 = arith.constant 0.000000e+00 : f32
    %167 = vector.shape_cast %164 : vector<8x1xf32> to vector<8x1xf32>
    %168 = vector.broadcast %167 : vector<8x1xf32> to vector<8x128xf32>
    %169 = vector.broadcast %cst_44 : f32 to vector<8x128xf32>
    %170 = arith.select %166, %168, %169 : vector<8x128xi1>, vector<8x128xf32>
    %171 = arith.addf %162, %170 : vector<8x128xf32>
    %cst_45 = arith.constant dense<0.000000e+00> : vector<8xf32>
    %172 = vector.multi_reduction <add>, %53, %cst_45 [1] : vector<8x2xf32> to vector<8xf32>
    %173 = vector.shape_cast %172 : vector<8xf32> to vector<8x1xf32>
    %c3_i32 = arith.constant 3 : i32
    %174 = vector.broadcast %c3_i32 : i32 to vector<8x128xi32>
    %175 = arith.cmpi eq, %143, %174 : vector<8x128xi32>
    %cst_46 = arith.constant 0.000000e+00 : f32
    %176 = vector.shape_cast %173 : vector<8x1xf32> to vector<8x1xf32>
    %177 = vector.broadcast %176 : vector<8x1xf32> to vector<8x128xf32>
    %178 = vector.broadcast %cst_46 : f32 to vector<8x128xf32>
    %179 = arith.select %175, %177, %178 : vector<8x128xi1>, vector<8x128xf32>
    %180 = arith.addf %171, %179 : vector<8x128xf32>
    %cst_47 = arith.constant dense<0.000000e+00> : vector<8xf32>
    %181 = vector.multi_reduction <add>, %136, %cst_47 [1] : vector<8x2xf32> to vector<8xf32>
    %182 = vector.shape_cast %181 : vector<8xf32> to vector<8x1xf32>
    %c4_i32 = arith.constant 4 : i32
    %183 = vector.broadcast %c4_i32 : i32 to vector<8x128xi32>
    %184 = arith.cmpi eq, %143, %183 : vector<8x128xi32>
    %cst_48 = arith.constant 0.000000e+00 : f32
    %185 = vector.shape_cast %182 : vector<8x1xf32> to vector<8x1xf32>
    %186 = vector.broadcast %185 : vector<8x1xf32> to vector<8x128xf32>
    %187 = vector.broadcast %cst_48 : f32 to vector<8x128xf32>
    %188 = arith.select %184, %186, %187 : vector<8x128xi1>, vector<8x128xf32>
    %189 = arith.addf %180, %188 : vector<8x128xf32>
    %cst_49 = arith.constant dense<0.000000e+00> : vector<8xf32>
    %190 = vector.multi_reduction <add>, %140, %cst_49 [1] : vector<8x2xf32> to vector<8xf32>
    %191 = vector.shape_cast %190 : vector<8xf32> to vector<8x1xf32>
    %c5_i32 = arith.constant 5 : i32
    %192 = vector.broadcast %c5_i32 : i32 to vector<8x128xi32>
    %193 = arith.cmpi eq, %143, %192 : vector<8x128xi32>
    %cst_50 = arith.constant 0.000000e+00 : f32
    %194 = vector.shape_cast %191 : vector<8x1xf32> to vector<8x1xf32>
    %195 = vector.broadcast %194 : vector<8x1xf32> to vector<8x128xf32>
    %196 = vector.broadcast %cst_50 : f32 to vector<8x128xf32>
    %197 = arith.select %193, %195, %196 : vector<8x128xi1>, vector<8x128xf32>
    %198 = arith.addf %189, %197 : vector<8x128xf32>
    %cst_51 = arith.constant dense<0.000000e+00> : vector<8xf32>
    %199 = vector.multi_reduction <add>, %142, %cst_51 [1] : vector<8x2xf32> to vector<8xf32>
    %200 = vector.shape_cast %199 : vector<8xf32> to vector<8x1xf32>
    %c6_i32 = arith.constant 6 : i32
    %201 = vector.broadcast %c6_i32 : i32 to vector<8x128xi32>
    %202 = arith.cmpi eq, %143, %201 : vector<8x128xi32>
    %cst_52 = arith.constant 0.000000e+00 : f32
    %203 = vector.shape_cast %200 : vector<8x1xf32> to vector<8x1xf32>
    %204 = vector.broadcast %203 : vector<8x1xf32> to vector<8x128xf32>
    %205 = vector.broadcast %cst_52 : f32 to vector<8x128xf32>
    %206 = arith.select %202, %204, %205 : vector<8x128xi1>, vector<8x128xf32>
    %207 = arith.addf %198, %206 : vector<8x128xf32>
    %c0_53 = arith.constant 0 : index
    %c0_54 = arith.constant 0 : index
    %208 = vector.load %arg7[%c0_53, %c0_54] : memref<8x128xf32, #tpu.memory_space<vmem>>, vector<8x128xf32>
    %209 = arith.addf %208, %207 : vector<8x128xf32>
    %c0_55 = arith.constant 0 : index
    %c0_56 = arith.constant 0 : index
    %210 = vector.load %arg7[%c0_55, %c0_56] : memref<8x128xf32, #tpu.memory_space<vmem>>, vector<8x128xf32>
    tpu.vector_store %arg7[%c0_55, %c0_56], %209 {strides = array<i32>} : memref<8x128xf32, #tpu.memory_space<vmem>>, vector<8x128xf32>,
    %c0_i32_57 = arith.constant 0 : i32
    %211 = arith.cmpi eq, %arg1, %c0_i32_57 : i32
    %212 = arith.extui %211 : i1 to i32
    %c0_i32_58 = arith.constant 0 : i32
    %213 = arith.cmpi ne, %212, %c0_i32_58 : i32
    scf.if %213 {
      %c0_59 = arith.constant 0 : index
      %c0_60 = arith.constant 0 : index
      %214 = vector.load %arg7[%c0_59, %c0_60] : memref<8x128xf32, #tpu.memory_space<vmem>>, vector<8x128xf32>
      %c0_61 = arith.constant 0 : index
      %c0_62 = arith.constant 0 : index
      %c0_63 = arith.constant 0 : index
      %215 = vector.load %arg6[%c0_61, %c0_62, %c0_63] : memref<1x8x128xf32, #tpu.memory_space<vmem>>, vector<1x8x128xf32>
      %216 = vector.shape_cast %215 : vector<1x8x128xf32> to vector<8x128xf32>
      %217 = vector.shape_cast %214 : vector<8x128xf32> to vector<1x8x128xf32>
      tpu.vector_store %arg6[%c0_61, %c0_62, %c0_63], %217 {strides = array<i32>} : memref<1x8x128xf32, #tpu.memory_space<vmem>>, vector<1x8x128xf32>,
    } else {
    }
    return
  }
  func.func @transform_0(%arg0: i32, %arg1: i32) -> (i32, i32) {
    %c1_i32 = arith.constant 1 : i32
    %0 = arith.muli %arg0, %c1_i32 : i32
    %1 = arith.addi %0, %arg1 : i32
    %c0_i32 = arith.constant 0 : i32
    %2 = arith.minsi %1, %c0_i32 : i32
    %c0_i32_0 = arith.constant 0 : i32
    %c0_i32_1 = arith.constant 0 : i32
    return %c0_i32_0, %2 : i32, i32
  }
  func.func @transform_1(%arg0: i32, %arg1: i32) -> (i32, i32) {
    %c1_i32 = arith.constant 1 : i32
    %0 = arith.muli %arg0, %c1_i32 : i32
    %1 = arith.addi %0, %arg1 : i32
    %c0_i32 = arith.constant 0 : i32
    %2 = arith.minsi %1, %c0_i32 : i32
    %c0_i32_0 = arith.constant 0 : i32
    %c0_i32_1 = arith.constant 0 : i32
    return %c0_i32_0, %2 : i32, i32
  }
  func.func @transform_2(%arg0: i32, %arg1: i32) -> (i32, i32) {
    %c1_i32 = arith.constant 1 : i32
    %0 = arith.muli %arg0, %c1_i32 : i32
    %1 = arith.addi %0, %arg1 : i32
    %c0_i32 = arith.constant 0 : i32
    %2 = arith.minsi %1, %c0_i32 : i32
    %c0_i32_0 = arith.constant 0 : i32
    %c0_i32_1 = arith.constant 0 : i32
    return %c0_i32_0, %2 : i32, i32
  }
  func.func @transform_3(%arg0: i32, %arg1: i32) -> (i32, i32) {
    %c1_i32 = arith.constant 1 : i32
    %0 = arith.muli %arg0, %c1_i32 : i32
    %1 = arith.addi %0, %arg1 : i32
    %c0_i32 = arith.constant 0 : i32
    %2 = arith.minsi %1, %c0_i32 : i32
    %c0_i32_0 = arith.constant 0 : i32
    %c0_i32_1 = arith.constant 0 : i32
    return %c0_i32_0, %2 : i32, i32
  }
  func.func @transform_4(%arg0: i32, %arg1: i32) -> (i32, i32, i32) {
    %c0_i32 = arith.constant 0 : i32
    %c0_i32_0 = arith.constant 0 : i32
    %c0_i32_1 = arith.constant 0 : i32
    return %arg0, %c0_i32, %c0_i32_0 : i32, i32, i32
  }
}

</mosaic_0001>

<llo_original>
// kernel: tpu_custom_call.1
$region0: #{tpu_custom_call.1}
  #allocation0 [shape = 'u32[]', space=smem, size = 0x4, offset = 0x4, fixed_abs, tag = 'smem constant byte address 0x4 - core index']
  #allocation1 [shape = 'u32[144,128]{1,0:T(1,128)}', space=vmem, size = 0x12000, scoped, tag = 'internal scratch']
  #allocation2 [shape = 'f32[8,128]{1,0:T(8,128)}', space=vmem, size = 0x1000, scoped, tag = 'scratch operand']
  %s0 = inlined_call_operand.vmem [shape: f32[16,2], index: 0, kind: input, shape index: {}]
  %s1 = inlined_call_operand.vmem [shape: f32[32,2], index: 1, kind: input, shape index: {}]
  %s2 = inlined_call_operand.vmem [shape: s32[8,2], index: 2, kind: input, shape index: {}]
  %s3 = inlined_call_operand.vmem [shape: f32[32,2], index: 3, kind: input, shape index: {}]
  %s4 = inlined_call_operand.hbm [shape: f32[1,8,128], index: 4, kind: output, shape index: {}]
  %s5 = sld [smem:[#allocation0]]
  $region34: #{tpu_custom_call.1} parent=0
    _
  %s7 = ssub.s32 1, %s5
  %s8 = scalar_select 0, %s7, %s5
  $region1: #{tpu_custom_call.1} parent=0
    #allocation3 [shape = 'u8[4096]{0}', space=vmem, size = 0x1000, scoped, tag = 'output window, operand 0, single buffered']
    #allocation4 [shape = 's32[1]{0}', space=sflag, size = 0x4, scoped, tag = 'scoped memory for tpu_custom_call.1']
    %9 = vsyncpa [#allocation4], 0
    // Predicated region
    $region2: #{tpu_custom_call.1} parent=1 // pred_check
      _
    $region3: #{tpu_custom_call.1} parent=1 // pred_check_branch
      %11 = sbr.rel (0) target = $region5
    $region4: #{tpu_custom_call.1} parent=1 // pred_region
      %s12 = sadd.s32 0, 0
      %p13 = scmp.lt.s32.totalorder %s12, 0
      %s14 = scalar_select %p13, %s12, 0
      %p15 = scmp.lt.s32.totalorder %s14, 0
      %s16 = scalar_select %p15, %s14, 0
      %s17 = smul.addr %s16, 8
      %s18 = scalar_lea.vmem %s0, %s17
      %s19 = sadd.s32 0, 0
      %p20 = scmp.lt.s32.totalorder %s19, 0
      %s21 = scalar_select %p20, %s19, 0
    $region5: #{tpu_custom_call.1} parent=1 // pred_fallthru
      _
    // Predicated region
    $region6: #{tpu_custom_call.1} parent=1 // pred_check
      _
    $region7: #{tpu_custom_call.1} parent=1 // pred_check_branch
      %23 = sbr.rel (0) target = $region9
    $region8: #{tpu_custom_call.1} parent=1 // pred_region
      %s24 = sadd.s32 0, 0
      %p25 = scmp.lt.s32.totalorder %s24, 0
      %s26 = scalar_select %p25, %s24, 0
      %p27 = scmp.lt.s32.totalorder %s26, 0
      %s28 = scalar_select %p27, %s26, 0
      %s29 = smul.addr %s28, 8
      %s30 = scalar_lea.vmem %s1, %s29
      %s31 = sadd.s32 0, 0
      %p32 = scmp.lt.s32.totalorder %s31, 0
      %s33 = scalar_select %p32, %s31, 0
    $region9: #{tpu_custom_call.1} parent=1 // pred_fallthru
      _
    // Predicated region
    $region10: #{tpu_custom_call.1} parent=1 // pred_check
      _
    $region11: #{tpu_custom_call.1} parent=1 // pred_check_branch
      %35 = sbr.rel (0) target = $region13
    $region12: #{tpu_custom_call.1} parent=1 // pred_region
      %s36 = sadd.s32 0, 0
      %p37 = scmp.lt.s32.totalorder %s36, 0
      %s38 = scalar_select %p37, %s36, 0
      %p39 = scmp.lt.s32.totalorder %s38, 0
      %s40 = scalar_select %p39, %s38, 0
      %s41 = smul.addr %s40, 8
      %s42 = scalar_lea.vmem %s2, %s41
      %s43 = sadd.s32 0, 0
      %p44 = scmp.lt.s32.totalorder %s43, 0
      %s45 = scalar_select %p44, %s43, 0
    $region13: #{tpu_custom_call.1} parent=1 // pred_fallthru
      _
    // Predicated region
    $region14: #{tpu_custom_call.1} parent=1 // pred_check
      _
    $region15: #{tpu_custom_call.1} parent=1 // pred_check_branch
      %47 = sbr.rel (0) target = $region17
    $region16: #{tpu_custom_call.1} parent=1 // pred_region
      %s48 = sadd.s32 0, 0
      %p49 = scmp.lt.s32.totalorder %s48, 0
      %s50 = scalar_select %p49, %s48, 0
      %p51 = scmp.lt.s32.totalorder %s50, 0
      %s52 = scalar_select %p51, %s50, 0
      %s53 = smul.addr %s52, 8
      %s54 = scalar_lea.vmem %s3, %s53
      %s55 = sadd.s32 0, 0
      %p56 = scmp.lt.s32.totalorder %s55, 0
      %s57 = scalar_select %p56, %s55, 0
    $region17: #{tpu_custom_call.1} parent=1 // pred_fallthru
      _
    %s58 = sadd.s32 0, 0
    %p59 = scmp.lt.s32.totalorder %s58, 0
    %s60 = scalar_select %p59, %s58, 0
    %p61 = scmp.lt.s32.totalorder %s60, 0
    %s62 = scalar_select %p61, %s60, 0
    %s63 = smul.addr %s62, 8
    %s64 = scalar_lea.vmem %s0, %s63
    %s65 = sadd.s32 0, 0
    %p66 = scmp.lt.s32.totalorder %s65, 0
    %s67 = scalar_select %p66, %s65, 0
    %p68 = scmp.lt.s32.totalorder %s67, 0
    %s69 = scalar_select %p68, %s67, 0
    %s70 = smul.addr %s69, 8
    %s71 = scalar_lea.vmem %s1, %s70
    %s72 = sadd.s32 0, 0
    %p73 = scmp.lt.s32.totalorder %s72, 0
    %s74 = scalar_select %p73, %s72, 0
    %p75 = scmp.lt.s32.totalorder %s74, 0
    %s76 = scalar_select %p75, %s74, 0
    %s77 = smul.addr %s76, 8
    %s78 = scalar_lea.vmem %s2, %s77
    %s79 = sadd.s32 0, 0
    %p80 = scmp.lt.s32.totalorder %s79, 0
    %s81 = scalar_select %p80, %s79, 0
    %p82 = scmp.lt.s32.totalorder %s81, 0
    %s83 = scalar_select %p82, %s81, 0
    %s84 = smul.addr %s83, 8
    %s85 = scalar_lea.vmem %s3, %s84
    %s86 = sadd.s32 0, 0
    %p87 = scmp.lt.s32.totalorder %s86, 0
    %s88 = scalar_select %p87, %s86, 0
    %p89 = scmp.lt.s32.totalorder %s88, 0
    %s90 = scalar_select %p89, %s88, 0
    %s91 = smul.addr %s90, 8
    %s92 = scalar_lea.vmem %s0, %s91
    %s93 = sadd.s32 0, 0
    %p94 = scmp.lt.s32.totalorder %s93, 0
    %s95 = scalar_select %p94, %s93, 0
    %s96 = sadd.s32 0, 0
    %p97 = scmp.lt.s32.totalorder %s96, 0
    %s98 = scalar_select %p97, %s96, 0
    %p99 = scmp.lt.s32.totalorder %s98, 0
    %s100 = scalar_select %p99, %s98, 0
    %s101 = smul.addr %s100, 8
    %s102 = scalar_lea.vmem %s1, %s101
    %s103 = sadd.s32 0, 0
    %p104 = scmp.lt.s32.totalorder %s103, 0
    %s105 = scalar_select %p104, %s103, 0
    %s106 = sadd.s32 0, 0
    %p107 = scmp.lt.s32.totalorder %s106, 0
    %s108 = scalar_select %p107, %s106, 0
    %p109 = scmp.lt.s32.totalorder %s108, 0
    %s110 = scalar_select %p109, %s108, 0
    %s111 = smul.addr %s110, 8
    %s112 = scalar_lea.vmem %s2, %s111
    %s113 = sadd.s32 0, 0
    %p114 = scmp.lt.s32.totalorder %s113, 0
    %s115 = scalar_select %p114, %s113, 0
    %s116 = sadd.s32 0, 0
    %p117 = scmp.lt.s32.totalorder %s116, 0
    %s118 = scalar_select %p117, %s116, 0
    %p119 = scmp.lt.s32.totalorder %s118, 0
    %s120 = scalar_select %p119, %s118, 0
    %s121 = smul.addr %s120, 8
    %s122 = scalar_lea.vmem %s3, %s121
    %s123 = sadd.s32 0, 0
    %p124 = scmp.lt.s32.totalorder %s123, 0
    %s125 = scalar_select %p124, %s123, 0
    %p126 = scmp.eq.s32.totalorder 0, 0
    // Predicated region
    $region18: #{tpu_custom_call.1} parent=1 // pred_check
      %p127 = pneg %p126
    $region19: #{tpu_custom_call.1} parent=1 // pred_check_branch
      %129 = sbr.rel (%p127) target = $region21
    $region20: #{tpu_custom_call.1} parent=1 // pred_region
      %130 = vst [vmem:[#allocation2] sm:$0xff] 0.0
    $region21: #{tpu_custom_call.1} parent=1 // pred_fallthru
      _
    %v131 = vld [vmem:[%s92] sm:$0xff]
    %v132 = vld [vmem:[%s92 + $0x8] sm:$0xff]
    %v133 = vld [vmem:[%s102] sm:$0xff]
    %v134 = vld [vmem:[%s102 + $0x8] sm:$0xff]
    %v135 = vld [vmem:[%s102 + $0x10] sm:$0xff]
    %v136 = vld [vmem:[%s102 + $0x18] sm:$0xff]
    %v137 = vld [vmem:[%s122] sm:$0xff]
    %v138 = vld [vmem:[%s122 + $0x8] sm:$0xff]
    %v139 = vld [vmem:[%s122 + $0x10] sm:$0xff]
    %v140 = vld [vmem:[%s122 + $0x18] sm:$0xff]
    %v141 = vld [vmem:[%s112] sm:$0xff]
    %v142 = vlaneseq
    %v143 = vshrl.u32 %v142, 7
    %v144 = vlaneseq
    %v145 = vand.u32 %v144, 127
    %s146 = sadd.s32 0, 0
    %s147 = smul.u32 %s146, 2
    %v148 = vstv %s147
    %v149 = vadd.s32 %v148, %v145
    %vm150 = vcmp.lt.s32.totalorder %v149, 2
    %v151 = vmul.u32 %v143, 2
    %v152 = vadd.s32 %v151, %v149
    %vm153 = vcmp.lt.s32.totalorder %v152, 16
    %vm154 = vmand %vm150, %vm153
    %v155 = vmax.f32 %v131, %v132
    %v156 = vmin.f32 %v131, %v132
    %v157 = vsub.f32 %v156, %v155
    %v158 = vmul.f32 %v157, 1.442695
    %v159 = vpow.pop %v158
    %v160 = vadd.f32 %v159, 1.0
    %v161 = vlog2.pop %v160
    %v162 = vmul.f32 %v161, 0.6931472
    %v163 = vadd.f32 %v155, %v162
    %vm164 = vcmp.eq.s32.totalorder %v141, 1
    %v165 = vsel %vm164, %v132, %v131
    %v166 = vsub.f32 %v163, %v165
    %v167 = vsel %vm164, 0.0625, 1.0
    %v168 = vmul.f32 %v167, %v166
    %v169 = vsel %vm154, %v168, 0.0
    %v170 = vsel %vm154, %v167, 0.0
    %vm171 = vmxor %vm164, 1
    %vm172 = vmand %vm154, %vm171
    %v173 = vsel %vm172, 1, 0
    %v174 = vcvt.s32.f32 %v173
    %vm175 = vcmp.ge.f32.partialorder %v165, %v155
    %vm176 = vmand %vm172, %vm175
    %v177 = vsel %vm176, 1, 0
    %v178 = vcvt.s32.f32 %v177
    %v179 = vsub.f32 %v133, %v137
    %v180 = vand.u32 2147483647, %v179
    %v181 = vsub.f32 %v134, %v138
    %v182 = vand.u32 2147483647, %v181
    %v183 = vadd.f32 %v180, %v182
    %v184 = vsub.f32 %v135, %v139
    %v185 = vand.u32 2147483647, %v184
    %v186 = vadd.f32 %v183, %v185
    %v187 = vsub.f32 %v136, %v140
    %v188 = vand.u32 2147483647, %v187
    %v189 = vadd.f32 %v186, %v188
    %v190 = vmul.f32 %v135, 0.5
    %v191 = vsub.f32 %v133, %v190
    %v192 = vmul.f32 %v136, 0.5
    %v193 = vsub.f32 %v134, %v192
    %v194 = vadd.f32 %v133, %v190
    %v195 = vadd.f32 %v134, %v192
    %v196 = vmul.f32 %v139, 0.5
    %v197 = vsub.f32 %v137, %v196
    %v198 = vmul.f32 %v140, 0.5
    %v199 = vsub.f32 %v138, %v198
    %v200 = vadd.f32 %v137, %v196
    %v201 = vadd.f32 %v138, %v198
    %v202 = vsub.f32 %v194, %v191
    %v203 = vsub.f32 %v195, %v193
    %v204 = vmul.f32 %v202, %v203
    %v205 = vsub.f32 %v200, %v197
    %v206 = vsub.f32 %v201, %v199
    %v207 = vmul.f32 %v205, %v206
    %v208 = vmin.f32 %v194, %v200
    %v209 = vmax.f32 %v191, %v197
    %v210 = vsub.f32 %v208, %v209
    %v211 = vmax.f32 %v210, 0.0
    %v212 = vmin.f32 %v195, %v201
    %v213 = vmax.f32 %v193, %v199
    %v214 = vsub.f32 %v212, %v213
    %v215 = vmax.f32 %v214, 0.0
    %v216 = vmul.f32 %v211, %v215
    %v217 = vadd.f32 %v204, %v207
    %v218 = vsub.f32 %v217, %v216
    %v219 = vmax.f32 %v218, 1e-12
    %v220 = vrcp.pop %v219
    %v221 = vmul.f32 %v216, %v220
    %v222 = vmax.f32 %v194, %v200
    %v223 = vmin.f32 %v191, %v197
    %v224 = vsub.f32 %v222, %v223
    %v225 = vmax.f32 %v224, 0.0
    %v226 = vmax.f32 %v195, %v201
    %v227 = vmin.f32 %v193, %v199
    %v228 = vsub.f32 %v226, %v227
    %v229 = vmax.f32 %v228, 0.0
    %v230 = vmul.f32 %v225, %v229
    %v231 = vsub.f32 %v230, %v218
    %v232 = vmax.f32 %v230, 1e-12
    %v233 = vrcp.pop %v232
    %v234 = vmul.f32 %v231, %v233
    %v235 = vsub.f32 %v221, %v234
    %v236 = vsel %vm172, %v189, 0.0
    %v237 = vsub.f32 1.0, %v235
    %v238 = vsel %vm172, %v237, 0.0
    %v239 = vsel %vm172, %v221, 0.0
    %vm240 = vcmask 15360
    %v241 = vsel %vm240, %v169, 0.0
    %242 = vadd.xlane.f32.xlu0 %v241
    %v243 = vpop.xlane.xlu0 %242
    %vm244 = vcmp.eq.s32.totalorder %v145, 0
    %v245 = vsel %vm244, %v243, 0.0
    %v246 = vadd.f32 %v245, 0.0
    %v247 = vsel %vm240, %v170, 0.0
    %248 = vadd.xlane.f32.xlu0 %v247
    %v249 = vpop.xlane.xlu0 %248
    %vm250 = vcmp.eq.s32.totalorder %v145, 1
    %v251 = vsel %vm250, %v249, 0.0
    %v252 = vadd.f32 %v246, %v251
    %v253 = vsel %vm240, %v174, 0.0
    %254 = vadd.xlane.f32.xlu0 %v253
    %v255 = vpop.xlane.xlu0 %254
    %vm256 = vcmp.eq.s32.totalorder %v145, 2
    %v257 = vsel %vm256, %v255, 0.0
    %v258 = vadd.f32 %v252, %v257
    %v259 = vsel %vm240, %v178, 0.0
    %260 = vadd.xlane.f32.xlu0 %v259
    %v261 = vpop.xlane.xlu0 %260
    %vm262 = vcmp.eq.s32.totalorder %v145, 3
    %v263 = vsel %vm262, %v261, 0.0
    %v264 = vadd.f32 %v258, %v263
    %v265 = vsel %vm240, %v236, 0.0
    %266 = vadd.xlane.f32.xlu0 %v265
    %v267 = vpop.xlane.xlu0 %266
    %vm268 = vcmp.eq.s32.totalorder %v145, 4
    %v269 = vsel %vm268, %v267, 0.0
    %v270 = vadd.f32 %v264, %v269
    %v271 = vsel %vm240, %v238, 0.0
    %272 = vadd.xlane.f32.xlu0 %v271
    %v273 = vpop.xlane.xlu0 %272
    %vm274 = vcmp.eq.s32.totalorder %v145, 5
    %v275 = vsel %vm274, %v273, 0.0
    %v276 = vadd.f32 %v270, %v275
    %v277 = vsel %vm240, %v239, 0.0
    %278 = vadd.xlane.f32.xlu0 %v277
    %v279 = vpop.xlane.xlu0 %278
    %vm280 = vcmp.eq.s32.totalorder %v145, 6
    %v281 = vsel %vm280, %v279, 0.0
    %v282 = vadd.f32 %v276, %v281
    %v283 = vld [vmem:[#allocation2] sm:$0xff]
    %v284 = vadd.f32 %v283, %v282
    %285 = vst [vmem:[#allocation2] sm:$0xff] %v284
    // Predicated region
    $region22: #{tpu_custom_call.1} parent=1 // pred_check
      %p286 = pneg %p126
    $region23: #{tpu_custom_call.1} parent=1 // pred_check_branch
      %288 = sbr.rel (%p286) target = $region25
    $region24: #{tpu_custom_call.1} parent=1 // pred_region
      %v289 = vld [vmem:[#allocation2] sm:$0xff]
      %290 = vst [vmem:[#allocation3] sm:$0xff] %v289
    $region25: #{tpu_custom_call.1} parent=1 // pred_fallthru
      _
    // Predicated region
    $region26: #{tpu_custom_call.1} parent=1 // pred_check
      _
    $region27: #{tpu_custom_call.1} parent=1 // pred_check_branch
      %292 = sbr.rel (0) target = $region29
    $region28: #{tpu_custom_call.1} parent=1 // pred_region
      %s294 = ssub.s32 128, 128
      %295 = vsyncadd [#allocation4], %s294
      %s297 = sshll.u32 [#allocation3], 4
      %s298 = int_to_ptr.vmem [resolvable:$true] %s297
      %300 = dma.vmem_to_hbm [thread:$0]  %s298, 128, %s4, [#allocation4]
    $region29: #{tpu_custom_call.1} parent=1 // pred_fallthru
      _
    // Predicated region
    $region30: #{tpu_custom_call.1} parent=1 // pred_check
      _
    $region31: #{tpu_custom_call.1} parent=1 // pred_check_branch
      %302 = sbr.rel (0) target = $region33
    $region32: #{tpu_custom_call.1} parent=1 // pred_region
      %303 = dma.done [#allocation4], 128
    $region33: #{tpu_custom_call.1} parent=1 // pred_fallthru
      _
    %304 = vsyncpa [#allocation4], 1

</llo_original>
